<compile_context>
chip_gen: v7x
topology: tpu7x:2x2x1
jax: 0.10.0
libtpu: 0.0.40
codegen_flags: <defaults>
</compile_context>

<pallas_src>
import jax
import jax.numpy as jnp
from jax.experimental import pallas as pl
from jax.experimental.pallas import tpu as pltpu


def _mlp_kernel(x_ref, w1_ref, b1_ref, w2_ref, b2_ref, o_ref):
    # (TILE_B, dim_input) @ (dim_input, hidden) with f32 accumulation on the MXU.
    h = jnp.dot(x_ref[...], w1_ref[...], preferred_element_type=jnp.float32)
    h = jnp.maximum(h + b1_ref[...], 0.0)          # bias + ReLU in f32 (VPU)
    # TODO(synk): nn.Dropout(p=0.2) is identity at inference (model.eval());
    # training-mode dropout would mask via pltpu.prng_seed/prng_random_bits and
    # scale by 1/(1-p).
    h = h.astype(w2_ref.dtype)                     # MXU-native dtype for 2nd matmul
    out = jnp.dot(h, w2_ref[...], preferred_element_type=jnp.float32)
    out = out + b2_ref[...]
    o_ref[...] = out.astype(o_ref.dtype)


def _choose_tile_b(B, dim_input, dim_output, x_itemsize,
                   stream_budget_bytes=16 * 1024 * 1024):
    """Largest batch tile s.t. double-buffered x/out streams fit the budget."""
    per_row = 2 * (dim_input * x_itemsize + dim_output * 4)  # 2 = double buffering
    max_rows = max(8, stream_budget_bytes // max(per_row, 1))
    tile = min(B, 4096, max_rows)
    if tile < B:
        tile = max(8, (tile // 8) * 8)  # sublane (8) alignment when actually tiling
    return tile


def net_forward(x, w1, b1, w2, b2, *, tile_b=None, compute_dtype=None):
    """x: (B, dim_input); w1: (dim_input, 20); b1: (1, 20);
       w2: (20, dim_output); b2: (1, dim_output).
       compute_dtype=jnp.bfloat16 halves x/w HBM traffic; accumulation stays f32."""
    B, dim_input = x.shape
    hidden = w1.shape[1]
    dim_output = w2.shape[1]

    if compute_dtype is not None:
        x = x.astype(compute_dtype)
        w1 = w1.astype(compute_dtype)
        w2 = w2.astype(compute_dtype)
    b1 = b1.astype(jnp.float32)
    b2 = b2.astype(jnp.float32)

    x_itemsize = jnp.dtype(x.dtype).itemsize
    if tile_b is None:
        tile_b = _choose_tile_b(B, dim_input, dim_output, x_itemsize)
    tile_b = min(tile_b, B)
    if tile_b < B:
        tile_b = max(8, (tile_b // 8) * 8)

    grid = (pl.cdiv(B, tile_b),)

    w_itemsize = jnp.dtype(w1.dtype).itemsize
    weight_bytes = ((dim_input * hidden + hidden * dim_output) * w_itemsize
                    + (hidden + dim_output) * 4)
    flops = 2 * B * (dim_input * hidden + hidden * dim_output)
    bytes_accessed = B * dim_input * x_itemsize + B * dim_output * 4 + weight_bytes

    return pl.pallas_call(
        _mlp_kernel,
        out_shape=jax.ShapeDtypeStruct((B, dim_output), jnp.float32),
        grid=grid,
        in_specs=[
            # x is streamed over the batch grid (auto double-buffered DMA).
            pl.BlockSpec((tile_b, dim_input), lambda i: (i, 0)),
            # Weights/biases: same block every step -> resident in VMEM.
            pl.BlockSpec((dim_input, hidden), lambda i: (0, 0)),
            pl.BlockSpec((1, hidden), lambda i: (0, 0)),
            pl.BlockSpec((hidden, dim_output), lambda i: (0, 0)),
            pl.BlockSpec((1, dim_output), lambda i: (0, 0)),
        ],
        out_specs=pl.BlockSpec((tile_b, dim_output), lambda i: (i, 0)),
        compiler_params=pltpu.CompilerParams(
            # Batch tiles are independent -> megacore sharding on v7x.
            dimension_semantics=("parallel",),
            # Streaming buffers budgeted for ~16 MiB; 32 MiB scoped VMEM is safe on
            # every chip (v5e default is only 16 MiB; v7x physical is 64 MiB).
            vmem_limit_bytes=32 * 1024 * 1024,
        ),
        cost_estimate=pl.CostEstimate(
            flops=flops, bytes_accessed=bytes_accessed, transcendentals=0),
    )(x, w1, b1, w2, b2)


if __name__ == "__main__":
    # Small, module-consistent shapes; batch chosen to exercise multiple grid steps.
    batch, dim_input, hidden, dim_output = 256, 32, 20, 10

    key = jax.random.PRNGKey(0)
    kx, k1, k2, k3, k4 = jax.random.split(key, 5)

    x = jax.random.normal(kx, (batch, dim_input), dtype=jnp.float32)

    # Deterministic parameter init (PyTorch-Linear-like uniform bounds).
    bound1 = 1.0 / (dim_input ** 0.5)
    w1 = jax.random.uniform(k1, (dim_input, hidden), jnp.float32, -bound1, bound1)
    b1 = jax.random.uniform(k2, (1, hidden), jnp.float32, -bound1, bound1)
    bound2 = 1.0 / (hidden ** 0.5)
    w2 = jax.random.uniform(k3, (hidden, dim_output), jnp.float32, -bound2, bound2)
    b2 = jax.random.uniform(k4, (1, dim_output), jnp.float32, -bound2, bound2)

    # Reference in plain JAX (dropout = identity at inference).
    ref = jnp.maximum(x @ w1 + b1, 0.0) @ w2 + b2

    # f32 path; tile_b=64 forces a 4-step batch grid (double-buffered x stream).
    out = net_forward(x, w1, b1, w2, b2, tile_b=64)
    jax.block_until_ready(out)
    assert out.shape == (batch, dim_output)
    assert jnp.allclose(out, ref, atol=1e-5, rtol=1e-5)

    # bf16 streaming path (halved x/w HBM traffic), f32 accumulation in-kernel.
    out_bf16 = net_forward(x, w1, b1, w2, b2, tile_b=64, compute_dtype=jnp.bfloat16)
    jax.block_until_ready(out_bf16)
    assert jnp.allclose(out_bf16, ref, atol=5e-2, rtol=5e-2)

    print("KERNEL_OK")
</pallas_src>

<mosaic_0001>
module attributes {stable_mosaic.version = 11 : i64} {
  func.func @_mlp_kernel(%arg0: i32, %arg1: memref<64x32xf32, #tpu.memory_space<vmem>>, %arg2: memref<32x20xf32, #tpu.memory_space<vmem>>, %arg3: memref<1x20xf32, #tpu.memory_space<vmem>>, %arg4: memref<20x10xf32, #tpu.memory_space<vmem>>, %arg5: memref<1x10xf32, #tpu.memory_space<vmem>>, %arg6: memref<64x10xf32, #tpu.memory_space<vmem>>) attributes {dimension_semantics = [#tpu.dimension_semantics<parallel>], iteration_bounds = array<i64: 4>, scalar_prefetch = 0 : i64, scratch_operands = 0 : i64, tpu.core_type = #tpu.core_type<tc>, window_params = [{transform_indices = @transform_0, window_bounds = array<i64: 64, 32>}, {pipeline_mode = #tpu.pipeline_mode<synchronous>, transform_indices = @transform_1, window_bounds = array<i64: 32, 20>}, {pipeline_mode = #tpu.pipeline_mode<synchronous>, transform_indices = @transform_2, window_bounds = array<i64: 1, 20>}, {pipeline_mode = #tpu.pipeline_mode<synchronous>, transform_indices = @transform_3, window_bounds = array<i64: 20, 10>}, {pipeline_mode = #tpu.pipeline_mode<synchronous>, transform_indices = @transform_4, window_bounds = array<i64: 1, 10>}, {transform_indices = @transform_5, window_bounds = array<i64: 64, 10>}]} {
    %c0 = arith.constant 0 : index
    %c0_0 = arith.constant 0 : index
    %0 = vector.load %arg1[%c0, %c0_0] : memref<64x32xf32, #tpu.memory_space<vmem>>, vector<64x32xf32>
    %c0_1 = arith.constant 0 : index
    %c0_2 = arith.constant 0 : index
    %1 = vector.load %arg2[%c0_1, %c0_2] : memref<32x20xf32, #tpu.memory_space<vmem>>, vector<32x20xf32>
    %cst = arith.constant dense<0.000000e+00> : vector<64x20xf32>
    %2 = tpu.matmul %0, %1, %cst {dimension_numbers = #tpu.dot_dimension_numbers<[1], [0], [0], [1], [0, 0, 1, 1], [], []>} : vector<64x32xf32>, vector<32x20xf32>, vector<64x20xf32> -> vector<64x20xf32>
    %c0_3 = arith.constant 0 : index
    %c0_4 = arith.constant 0 : index
    %3 = vector.load %arg3[%c0_3, %c0_4] : memref<1x20xf32, #tpu.memory_space<vmem>>, vector<1x20xf32>
    %4 = vector.broadcast %3 : vector<1x20xf32> to vector<64x20xf32>
    %5 = arith.addf %2, %4 : vector<64x20xf32>
    %cst_5 = arith.constant 0.000000e+00 : f32
    %6 = vector.broadcast %cst_5 : f32 to vector<64x20xf32>
    %7 = arith.maximumf %5, %6 : vector<64x20xf32>
    %c0_6 = arith.constant 0 : index
    %c0_7 = arith.constant 0 : index
    %8 = vector.load %arg4[%c0_6, %c0_7] : memref<20x10xf32, #tpu.memory_space<vmem>>, vector<20x10xf32>
    %cst_8 = arith.constant dense<0.000000e+00> : vector<64x10xf32>
    %9 = tpu.matmul %7, %8, %cst_8 {dimension_numbers = #tpu.dot_dimension_numbers<[1], [0], [0], [1], [0, 0, 1, 1], [], []>} : vector<64x20xf32>, vector<20x10xf32>, vector<64x10xf32> -> vector<64x10xf32>
    %c0_9 = arith.constant 0 : index
    %c0_10 = arith.constant 0 : index
    %10 = vector.load %arg5[%c0_9, %c0_10] : memref<1x10xf32, #tpu.memory_space<vmem>>, vector<1x10xf32>
    %11 = vector.broadcast %10 : vector<1x10xf32> to vector<64x10xf32>
    %12 = arith.addf %9, %11 : vector<64x10xf32>
    %c0_11 = arith.constant 0 : index
    %c0_12 = arith.constant 0 : index
    %13 = vector.load %arg6[%c0_11, %c0_12] : memref<64x10xf32, #tpu.memory_space<vmem>>, vector<64x10xf32>
    tpu.vector_store %arg6[%c0_11, %c0_12], %12 {strides = array<i32>} : memref<64x10xf32, #tpu.memory_space<vmem>>, vector<64x10xf32>,
    return
  }
  func.func @transform_0(%arg0: i32) -> (i32, i32) {
    %c0_i32 = arith.constant 0 : i32
    %c0_i32_0 = arith.constant 0 : i32
    return %arg0, %c0_i32 : i32, i32
  }
  func.func @transform_1(%arg0: i32) -> (i32, i32) {
    %c0_i32 = arith.constant 0 : i32
    %c0_i32_0 = arith.constant 0 : i32
    %c0_i32_1 = arith.constant 0 : i32
    return %c0_i32, %c0_i32_0 : i32, i32
  }
  func.func @transform_2(%arg0: i32) -> (i32, i32) {
    %c0_i32 = arith.constant 0 : i32
    %c0_i32_0 = arith.constant 0 : i32
    %c0_i32_1 = arith.constant 0 : i32
    return %c0_i32, %c0_i32_0 : i32, i32
  }
  func.func @transform_3(%arg0: i32) -> (i32, i32) {
    %c0_i32 = arith.constant 0 : i32
    %c0_i32_0 = arith.constant 0 : i32
    %c0_i32_1 = arith.constant 0 : i32
    return %c0_i32, %c0_i32_0 : i32, i32
  }
  func.func @transform_4(%arg0: i32) -> (i32, i32) {
    %c0_i32 = arith.constant 0 : i32
    %c0_i32_0 = arith.constant 0 : i32
    %c0_i32_1 = arith.constant 0 : i32
    return %c0_i32, %c0_i32_0 : i32, i32
  }
  func.func @transform_5(%arg0: i32) -> (i32, i32) {
    %c0_i32 = arith.constant 0 : i32
    %c0_i32_0 = arith.constant 0 : i32
    return %arg0, %c0_i32 : i32, i32
  }
}

</mosaic_0001>

<llo_original>
// kernel: tpu_custom_call.1
$region0: #{tpu_custom_call.1}
  #allocation0 [shape = 'u32[]', space=smem, size = 0x4, offset = 0x4, fixed_abs, tag = 'smem constant byte address 0x4 - core index']
  #allocation1 [shape = 'u32[144,128]{1,0:T(1,128)}', space=vmem, size = 0x12000, scoped, tag = 'internal scratch']
  %s0 = inlined_call_operand.vmem [shape: f32[256,32], index: 0, kind: input, shape index: {}]
  %s1 = inlined_call_operand.vmem [shape: f32[32,20], index: 1, kind: input, shape index: {}]
  %s2 = inlined_call_operand.vmem [shape: f32[1,20], index: 2, kind: input, shape index: {}]
  %s3 = inlined_call_operand.vmem [shape: f32[20,10], index: 3, kind: input, shape index: {}]
  %s4 = inlined_call_operand.vmem [shape: f32[1,10], index: 4, kind: input, shape index: {}]
  %s5 = inlined_call_operand.vmem [shape: f32[256,10], index: 5, kind: output, shape index: {}]
  %s6 = sld [smem:[#allocation0]]
  $region53: #{tpu_custom_call.1} parent=0
    _
  %s8 = ssub.s32 1, %s6
  %s9 = scalar_select 0, %s8, %s6
  loop: start=0, step=1, limit=6
  $region2: #{tpu_custom_call.1} parent=0 // loop_pre_header
    _
  $region3: #{tpu_custom_call.1} parent=0 // loop_header
    %s11 = sphi 0, %s15
    %p12 = scmp.ge.s32.totalorder %s11, 6
    %s21 = sphi 0, %s23
    %s24 = sphi 0, %s21
    %s25 = sphi 0, %s24
    %s41 = sphi 0, %s25
    %s45 = sphi 0, %s45
    %s47 = sphi 0, %s45
    %s48 = sphi 0, %s47
    %s62 = sphi 0, %s48
    %s66 = sphi 0, %s66
    %s68 = sphi 0, %s66
    %s69 = sphi 0, %s68
    %s83 = sphi 0, %s69
    %s87 = sphi 0, %s87
    %s89 = sphi 0, %s87
    %s90 = sphi 0, %s89
    %s104 = sphi 0, %s90
    %s108 = sphi 0, %s108
    %s110 = sphi 0, %s108
    %s111 = sphi 0, %s110
    %s125 = sphi 0, %s111
    %s131 = sphi 0, %s133
    %s134 = sphi 0, %s131
    %s135 = sphi 0, %s134
    %s151 = sphi 0, %s135
  $region4: #{tpu_custom_call.1} parent=0 // loop_header_branch
    %14 = sbr.rel (%p12) target = $region8
  $region5: #{tpu_custom_call.1} parent=0 // loop_body
    %s16 = ssub.s32 %s11, 1
    %s17 = ssub.s32 %s11, 2
    %s18 = sadd.s32 %s11, 1
    %s19 = ssub.s32 %s11, %s18
    %p20 = scmp.eq.s32.totalorder %s19, 0
    %s22 = sadd.s32 %s21, 1
    %s23 = scalar_select %p20, %s21, %s22
    %p26 = pneg %p20
    %p27 = scmp.eq.s32.totalorder %s11, 3
    %p28 = por %p26, %p27
    %p29 = scmp.ne.s32.totalorder %s21, %s24
    %p30 = scmp.eq.s32.totalorder %s11, 0
    %p31 = por %p29, %p30
    %p32 = scmp.ne.s32.totalorder %s21, %s24
    %p33 = scmp.eq.s32.totalorder %s16, 3
    %p34 = por %p32, %p33
    %p35 = scmp.ne.s32.totalorder %s24, %s25
    %p36 = scmp.eq.s32.totalorder %s16, 0
    %p37 = por %p35, %p36
    %p38 = scmp.ne.s32.totalorder %s24, %s25
    %p39 = scmp.eq.s32.totalorder %s17, 3
    %p40 = por %p38, %p39
    %p42 = scmp.ne.s32.totalorder %s25, %s41
    %p43 = scmp.eq.s32.totalorder %s17, 0
    %p44 = por %p42, %p43
    %s46 = sadd.s32 %s45, 1
    %p49 = scmp.eq.s32.totalorder %s11, 3
    %p50 = scmp.ne.s32.totalorder %s45, %s47
    %p51 = scmp.eq.s32.totalorder %s11, 0
    %p52 = por %p50, %p51
    %p53 = scmp.ne.s32.totalorder %s45, %s47
    %p54 = scmp.eq.s32.totalorder %s16, 3
    %p55 = por %p53, %p54
    %p56 = scmp.ne.s32.totalorder %s47, %s48
    %p57 = scmp.eq.s32.totalorder %s16, 0
    %p58 = por %p56, %p57
    %p59 = scmp.ne.s32.totalorder %s47, %s48
    %p60 = scmp.eq.s32.totalorder %s17, 3
    %p61 = por %p59, %p60
    %p63 = scmp.ne.s32.totalorder %s48, %s62
    %p64 = scmp.eq.s32.totalorder %s17, 0
    %p65 = por %p63, %p64
    %s67 = sadd.s32 %s66, 1
    %p70 = scmp.eq.s32.totalorder %s11, 3
    %p71 = scmp.ne.s32.totalorder %s66, %s68
    %p72 = scmp.eq.s32.totalorder %s11, 0
    %p73 = por %p71, %p72
    %p74 = scmp.ne.s32.totalorder %s66, %s68
    %p75 = scmp.eq.s32.totalorder %s16, 3
    %p76 = por %p74, %p75
    %p77 = scmp.ne.s32.totalorder %s68, %s69
    %p78 = scmp.eq.s32.totalorder %s16, 0
    %p79 = por %p77, %p78
    %p80 = scmp.ne.s32.totalorder %s68, %s69
    %p81 = scmp.eq.s32.totalorder %s17, 3
    %p82 = por %p80, %p81
    %p84 = scmp.ne.s32.totalorder %s69, %s83
    %p85 = scmp.eq.s32.totalorder %s17, 0
    %p86 = por %p84, %p85
    %s88 = sadd.s32 %s87, 1
    %p91 = scmp.eq.s32.totalorder %s11, 3
    %p92 = scmp.ne.s32.totalorder %s87, %s89
    %p93 = scmp.eq.s32.totalorder %s11, 0
    %p94 = por %p92, %p93
    %p95 = scmp.ne.s32.totalorder %s87, %s89
    %p96 = scmp.eq.s32.totalorder %s16, 3
    %p97 = por %p95, %p96
    %p98 = scmp.ne.s32.totalorder %s89, %s90
    %p99 = scmp.eq.s32.totalorder %s16, 0
    %p100 = por %p98, %p99
    %p101 = scmp.ne.s32.totalorder %s89, %s90
    %p102 = scmp.eq.s32.totalorder %s17, 3
    %p103 = por %p101, %p102
    %p105 = scmp.ne.s32.totalorder %s90, %s104
    %p106 = scmp.eq.s32.totalorder %s17, 0
    %p107 = por %p105, %p106
    %s109 = sadd.s32 %s108, 1
    %p112 = scmp.eq.s32.totalorder %s11, 3
    %p113 = scmp.ne.s32.totalorder %s108, %s110
    %p114 = scmp.eq.s32.totalorder %s11, 0
    %p115 = por %p113, %p114
    %p116 = scmp.ne.s32.totalorder %s108, %s110
    %p117 = scmp.eq.s32.totalorder %s16, 3
    %p118 = por %p116, %p117
    %p119 = scmp.ne.s32.totalorder %s110, %s111
    %p120 = scmp.eq.s32.totalorder %s16, 0
    %p121 = por %p119, %p120
    %p122 = scmp.ne.s32.totalorder %s110, %s111
    %p123 = scmp.eq.s32.totalorder %s17, 3
    %p124 = por %p122, %p123
    %p126 = scmp.ne.s32.totalorder %s111, %s125
    %p127 = scmp.eq.s32.totalorder %s17, 0
    %p128 = por %p126, %p127
    %s129 = ssub.s32 %s11, %s18
    %p130 = scmp.eq.s32.totalorder %s129, 0
    %s132 = sadd.s32 %s131, 1
    %s133 = scalar_select %p130, %s131, %s132
    %p136 = pneg %p130
    %p137 = scmp.eq.s32.totalorder %s11, 3
    %p138 = por %p136, %p137
    %p139 = scmp.ne.s32.totalorder %s131, %s134
    %p140 = scmp.eq.s32.totalorder %s11, 0
    %p141 = por %p139, %p140
    %p142 = scmp.ne.s32.totalorder %s131, %s134
    %p143 = scmp.eq.s32.totalorder %s16, 3
    %p144 = por %p142, %p143
    %p145 = scmp.ne.s32.totalorder %s134, %s135
    %p146 = scmp.eq.s32.totalorder %s16, 0
    %p147 = por %p145, %p146
    %p148 = scmp.ne.s32.totalorder %s134, %s135
    %p149 = scmp.eq.s32.totalorder %s17, 3
    %p150 = por %p148, %p149
    %p152 = scmp.ne.s32.totalorder %s135, %s151
    %p153 = scmp.eq.s32.totalorder %s17, 0
    %p154 = por %p152, %p153
    %p155 = scmp.le.s32.totalorder 1, %s11
    %p156 = scmp.lt.s32.totalorder %s11, 5
    %p157 = pnand %p155, %p156
    %p158 = pneg %p157
    // Predicated region
    $region9: #{tpu_custom_call.1} parent=5 // pred_check
      _
    $region10: #{tpu_custom_call.1} parent=5 // pred_check_branch
      %160 = sbr.rel (%p157) target = $region12
    $region11: #{tpu_custom_call.1} parent=5 // pred_region
      %s161 = ssub.s32 %s11, 1
      // Predicated region
      $region13: #{tpu_custom_call.1} parent=11 // pred_check
        %p162 = pneg %p58
      $region14: #{tpu_custom_call.1} parent=11 // pred_check_branch
        %164 = sbr.rel (%p162) target = $region16
      $region15: #{tpu_custom_call.1} parent=11 // pred_region
        _
      $region16: #{tpu_custom_call.1} parent=11 // pred_fallthru
        _
      // Predicated region
      $region17: #{tpu_custom_call.1} parent=11 // pred_check
        %p165 = pneg %p79
      $region18: #{tpu_custom_call.1} parent=11 // pred_check_branch
        %167 = sbr.rel (%p165) target = $region20
      $region19: #{tpu_custom_call.1} parent=11 // pred_region
        _
      $region20: #{tpu_custom_call.1} parent=11 // pred_fallthru
        _
      // Predicated region
      $region21: #{tpu_custom_call.1} parent=11 // pred_check
        %p168 = pneg %p100
      $region22: #{tpu_custom_call.1} parent=11 // pred_check_branch
        %170 = sbr.rel (%p168) target = $region24
      $region23: #{tpu_custom_call.1} parent=11 // pred_region
        _
      $region24: #{tpu_custom_call.1} parent=11 // pred_fallthru
        _
      // Predicated region
      $region25: #{tpu_custom_call.1} parent=11 // pred_check
        %p171 = pneg %p121
      $region26: #{tpu_custom_call.1} parent=11 // pred_check_branch
        %173 = sbr.rel (%p171) target = $region28
      $region27: #{tpu_custom_call.1} parent=11 // pred_region
        _
      $region28: #{tpu_custom_call.1} parent=11 // pred_fallthru
        _
    $region12: #{tpu_custom_call.1} parent=5 // pred_fallthru
      _
    %p174 = scmp.lt.s32.totalorder %s11, 4
    // Predicated region
    $region29: #{tpu_custom_call.1} parent=5 // pred_check
      %p175 = pneg %p174
    $region30: #{tpu_custom_call.1} parent=5 // pred_check_branch
      %177 = sbr.rel (%p175) target = $region32
    $region31: #{tpu_custom_call.1} parent=5 // pred_region
      // Predicated region
      $region33: #{tpu_custom_call.1} parent=31 // pred_check
        %p178 = pneg %p31
      $region34: #{tpu_custom_call.1} parent=31 // pred_check_branch
        %180 = sbr.rel (%p178) target = $region36
      $region35: #{tpu_custom_call.1} parent=31 // pred_region
        %s181 = smul.u32 8, %s11
        %p182 = scmp.lt.s32.totalorder %s181, 31
        %s183 = scalar_select %p182, %s181, 31
        %s184 = smul.addr %s183, 8
        %s185 = scalar_lea.vmem %s0, %s184
        %s186 = smul.u32 8, %s11
      $region36: #{tpu_custom_call.1} parent=31 // pred_fallthru
        _
    $region32: #{tpu_custom_call.1} parent=5 // pred_fallthru
      _
    %p187 = scmp.le.s32.totalorder 1, %s11
    %p188 = scmp.lt.s32.totalorder %s11, 5
    %p189 = pnand %p187, %p188
    %p190 = pneg %p189
    // Predicated region
    $region37: #{tpu_custom_call.1} parent=5 // pred_check
      _
    $region38: #{tpu_custom_call.1} parent=5 // pred_check_branch
      %192 = sbr.rel (%p189) target = $region40
    $region39: #{tpu_custom_call.1} parent=5 // pred_region
      %s193 = ssub.s32 %s11, 1
      %s194 = smul.u32 8, %s16
      %p195 = scmp.lt.s32.totalorder %s194, 31
      %s196 = scalar_select %p195, %s194, 31
      %s197 = smul.addr %s196, 8
      %s198 = scalar_lea.vmem %s0, %s197
      %p199 = pneg %p37
      %p200 = pneg %p34
      %p201 = pneg %p58
      %p202 = pneg %p55
      %p203 = pneg %p79
      %p204 = pneg %p76
      %p205 = pneg %p100
      %p206 = pneg %p97
      %p207 = pneg %p121
      %p208 = pneg %p118
      %p209 = pneg %p147
      %p210 = pneg %p144
      %s211 = smul.u32 8, %s16
      %p212 = scmp.lt.s32.totalorder %s211, 31
      %s213 = scalar_select %p212, %s211, 31
      %s214 = smul.addr %s213, 8
      %s215 = scalar_lea.vmem %s5, %s214
      %s216 = smul.u32 8, %s16
      %p217 = scmp.lt.s32.totalorder %s216, 31
      %s218 = scalar_select %p217, %s216, 31
      %s219 = smul.addr %s218, 8
      %s220 = scalar_lea.vmem %s0, %s219
      %s221 = smul.u32 8, %s16
      %s222 = smul.u32 8, %s16
      %p223 = scmp.lt.s32.totalorder %s222, 31
      %s224 = scalar_select %p223, %s222, 31
      %s225 = smul.addr %s224, 8
      %s226 = scalar_lea.vmem %s5, %s225
      %s227 = smul.u32 8, %s16
      %v228 = vld [vmem:[%s220] sm:$0xff]
      %v229 = vld [vmem:[%s220 + $0x8] sm:$0xff]
      %v230 = vld [vmem:[%s220 + $0x10] sm:$0xff]
      %v231 = vld [vmem:[%s220 + $0x18] sm:$0xff]
      %v232 = vld [vmem:[%s220 + $0x20] sm:$0xff]
      %v233 = vld [vmem:[%s220 + $0x28] sm:$0xff]
      %v234 = vld [vmem:[%s220 + $0x30] sm:$0xff]
      %v235 = vld [vmem:[%s220 + $0x38] sm:$0xff]
      %v236 = vld [vmem:[%s1] sm:$0xff]
      %v237 = vld [vmem:[%s1 + $0x8] sm:$0xff]
      %v238 = vld [vmem:[%s1 + $0x10] sm:$0xff]
      %v239 = vld [vmem:[%s1 + $0x18] sm:$0xff]
      %v240 = vld [vmem:[%s2] sm:$0x1]
      %v242 = vlaneseq
      %v243 = vshrl.u32 %v242, 7
      %v244 = vsub.s32 0, %v243
      %v245 = vrot.slane %v240, %v244
      %vm247 = vcmask 261120
      %v249 = vsel %vm247, %v228, 0
      %v252 = vsel %vm247, %v229, 0
      %v255 = vsel %vm247, %v230, 0
      %v258 = vsel %vm247, %v231, 0
      %v261 = vsel %vm247, %v232, 0
      %v264 = vsel %vm247, %v233, 0
      %v267 = vsel %vm247, %v234, 0
      %v270 = vsel %vm247, %v235, 0
      %272 = vmatprep.subr.mxu0 0.0
      %273 = vmatpush1.msra.mxu0 %v236
      %274 = vmatprep.subr.mxu0 0.0
      %275 = vmatpush1.msra.mxu0 %v237
      %276 = vmatprep.subr.mxu0 0.0
      %277 = vmatpush1.msra.mxu0 %v238
      %278 = vmatprep.subr.mxu0 0.0
      %279 = vmatpush1.msra.mxu0 %v239
      %280 = vmatprep.subr.mxu0 0.0
      %281 = vmatpush1.msra.mxu0 0.0
      %282 = vmatprep.subr.mxu0 0.0
      %283 = vmatpush1.msra.mxu0 0.0
      %284 = vmatprep.subr.mxu0 0.0
      %285 = vmatpush1.msra.mxu0 0.0
      %286 = vmatprep.subr.mxu0 0.0
      %287 = vmatpush1.msra.mxu0 0.0
      %288 = vmatprep.subr.mxu0 0.0
      %289 = vmatpush1.msra.mxu0 0.0
      %290 = vmatprep.subr.mxu0 0.0
      %291 = vmatpush1.msra.mxu0 0.0
      %292 = vmatprep.subr.mxu0 0.0
      %293 = vmatpush1.msra.mxu0 0.0
      %294 = vmatprep.subr.mxu0 0.0
      %295 = vmatpush1.msra.mxu0 0.0
      %296 = vmatprep.subr.mxu0 0.0
      %297 = vmatpush1.msra.mxu0 0.0
      %298 = vmatprep.subr.mxu0 0.0
      %299 = vmatpush1.msra.mxu0 0.0
      %300 = vmatprep.subr.mxu0 0.0
      %301 = vmatpush1.msra.mxu0 0.0
      %302 = vmatprep.subr.mxu0 0.0
      %303 = vmatpush1.msra.mxu0 0.0
      %304 = vmatprep.subr.mxu0 0.0
      %305 = vmatpush1.msra.mxu0 0.0
      %306 = vmatprep.subr.mxu0 0.0
      %307 = vmatpush1.msra.mxu0 0.0
      %308 = vmatprep.subr.mxu0 0.0
      %309 = vmatpush1.msra.mxu0 0.0
      %310 = vmatprep.subr.mxu0 0.0
      %311 = vmatpush1.msra.mxu0 0.0
      %312 = vmatprep.subr.mxu0 0.0
      %313 = vmatpush1.msra.mxu0 0.0
      %314 = vmatprep.subr.mxu0 0.0
      %315 = vmatpush1.msra.mxu0 0.0
      %316 = vmatprep.subr.mxu0 0.0
      %317 = vmatpush1.msra.mxu0 0.0
      %318 = vmatprep.subr.mxu0 0.0
      %319 = vmatpush1.msra.mxu0 0.0
      %320 = vmatprep.subr.mxu0 0.0
      %321 = vmatpush1.msra.mxu0 0.0
      %322 = vmatprep.subr.mxu0 0.0
      %323 = vmatpush1.msra.mxu0 0.0
      %324 = vmatprep.subr.mxu0 0.0
      %325 = vmatpush1.msra.mxu0 0.0
      %326 = vmatprep.subr.mxu0 0.0
      %327 = vmatpush1.msra.mxu0 0.0
      %328 = vmatprep.subr.mxu0 0.0
      %329 = vmatpush1.msra.mxu0 0.0
      %330 = vmatprep.subr.mxu0 0.0
      %331 = vmatpush1.msra.mxu0 0.0
      %332 = vmatprep.subr.mxu0 0.0
      %333 = vmatpush1.msra.mxu0 0.0
      %334 = vmatprep.subr.mxu0 0.0
      %335 = vmatpush1.msra.mxu0 0.0
      %336 = vmatprep.mubr.f32.mxu0 0.0
      %337 = vmatmul.mubr.f32.gmra.mrb[0].mxu0 %v249
      %v338 = vpop.f32.mrb[0].mxu0
      %v339 = vadd.f32 %v245, %v338
      %v340 = vpop.f32.mrb[0].mxu0
      %341 = vmatprep.mubr.f32.mxu0 0.0
      %342 = vmatmul.mubr.f32.gmra.mrb[0].mxu0 %v252
      %v343 = vpop.f32.mrb[0].mxu0
      %v344 = vadd.f32 %v245, %v343
      %v345 = vpop.f32.mrb[0].mxu0
      %346 = vmatprep.mubr.f32.mxu0 0.0
      %347 = vmatmul.mubr.f32.gmra.mrb[0].mxu0 %v255
      %v348 = vpop.f32.mrb[0].mxu0
      %v349 = vadd.f32 %v245, %v348
      %v350 = vpop.f32.mrb[0].mxu0
      %351 = vmatprep.mubr.f32.mxu0 0.0
      %352 = vmatmul.mubr.f32.gmra.mrb[0].mxu0 %v258
      %v353 = vpop.f32.mrb[0].mxu0
      %v354 = vadd.f32 %v245, %v353
      %v355 = vpop.f32.mrb[0].mxu0
      %356 = vmatprep.mubr.f32.mxu0 0.0
      %357 = vmatmul.mubr.f32.gmra.mrb[0].mxu0 %v261
      %v358 = vpop.f32.mrb[0].mxu0
      %v359 = vadd.f32 %v245, %v358
      %v360 = vpop.f32.mrb[0].mxu0
      %361 = vmatprep.mubr.f32.mxu0 0.0
      %362 = vmatmul.mubr.f32.gmra.mrb[0].mxu0 %v264
      %v363 = vpop.f32.mrb[0].mxu0
      %v364 = vadd.f32 %v245, %v363
      %v365 = vpop.f32.mrb[0].mxu0
      %366 = vmatprep.mubr.f32.mxu0 0.0
      %367 = vmatmul.mubr.f32.gmra.mrb[0].mxu0 %v267
      %v368 = vpop.f32.mrb[0].mxu0
      %v369 = vadd.f32 %v245, %v368
      %v370 = vpop.f32.mrb[0].mxu0
      %371 = vmatprep.mubr.f32.mxu0 0.0
      %372 = vmatmul.mubr.f32.gmra.mrb[0].mxu0 %v270
      %v373 = vpop.f32.mrb[0].mxu0
      %v374 = vadd.f32 %v245, %v373
      %v375 = vpop.f32.mrb[0].mxu0
      %376 = vdwg.mxu0
      %v377 = vmax.f32 %v339, 0.0
      %v378 = vmax.f32 %v344, 0.0
      %v379 = vmax.f32 %v349, 0.0
      %v380 = vmax.f32 %v354, 0.0
      %v381 = vmax.f32 %v359, 0.0
      %v382 = vmax.f32 %v364, 0.0
      %v383 = vmax.f32 %v369, 0.0
      %v384 = vmax.f32 %v374, 0.0
      %v385 = vld [vmem:[%s3] sm:$0xff]
      %v386 = vld [vmem:[%s3 + $0x8] sm:$0xff]
      %v387 = vld [vmem:[%s3 + $0x10] sm:$0xf]
      %v388 = vld [vmem:[%s4] sm:$0x1]
      %v390 = vlaneseq
      %v391 = vshrl.u32 %v390, 7
      %v392 = vsub.s32 0, %v391
      %v393 = vrot.slane %v388, %v392
      %vm395 = vcmask 162816
      %v397 = vsel %vm395, %v377, 0
      %v400 = vsel %vm395, %v378, 0
      %v403 = vsel %vm395, %v379, 0
      %v406 = vsel %vm395, %v380, 0
      %v409 = vsel %vm395, %v381, 0
      %v412 = vsel %vm395, %v382, 0
      %v415 = vsel %vm395, %v383, 0
      %v418 = vsel %vm395, %v384, 0
      %vm420 = vcmask 1043456
      %v422 = vsel %vm420, %v387, 0
      %424 = vmatprep.subr.mxu0 0.0
      %425 = vmatpush1.msra.mxu0 %v385
      %426 = vmatprep.subr.mxu0 0.0
      %427 = vmatpush1.msra.mxu0 %v386
      %428 = vmatprep.subr.mxu0 0.0
      %429 = vmatpush1.msra.mxu0 %v422
      %430 = vmatprep.subr.mxu0 0.0
      %431 = vmatpush1.msra.mxu0 0.0
      %432 = vmatprep.subr.mxu0 0.0
      %433 = vmatpush1.msra.mxu0 0.0
      %434 = vmatprep.subr.mxu0 0.0
      %435 = vmatpush1.msra.mxu0 0.0
      %436 = vmatprep.subr.mxu0 0.0
      %437 = vmatpush1.msra.mxu0 0.0
      %438 = vmatprep.subr.mxu0 0.0
      %439 = vmatpush1.msra.mxu0 0.0
      %440 = vmatprep.subr.mxu0 0.0
      %441 = vmatpush1.msra.mxu0 0.0
      %442 = vmatprep.subr.mxu0 0.0
      %443 = vmatpush1.msra.mxu0 0.0
      %444 = vmatprep.subr.mxu0 0.0
      %445 = vmatpush1.msra.mxu0 0.0
      %446 = vmatprep.subr.mxu0 0.0
      %447 = vmatpush1.msra.mxu0 0.0
      %448 = vmatprep.subr.mxu0 0.0
      %449 = vmatpush1.msra.mxu0 0.0
      %450 = vmatprep.subr.mxu0 0.0
      %451 = vmatpush1.msra.mxu0 0.0
      %452 = vmatprep.subr.mxu0 0.0
      %453 = vmatpush1.msra.mxu0 0.0
      %454 = vmatprep.subr.mxu0 0.0
      %455 = vmatpush1.msra.mxu0 0.0
      %456 = vmatprep.subr.mxu0 0.0
      %457 = vmatpush1.msra.mxu0 0.0
      %458 = vmatprep.subr.mxu0 0.0
      %459 = vmatpush1.msra.mxu0 0.0
      %460 = vmatprep.subr.mxu0 0.0
      %461 = vmatpush1.msra.mxu0 0.0
      %462 = vmatprep.subr.mxu0 0.0
      %463 = vmatpush1.msra.mxu0 0.0
      %464 = vmatprep.subr.mxu0 0.0
      %465 = vmatpush1.msra.mxu0 0.0
      %466 = vmatprep.subr.mxu0 0.0
      %467 = vmatpush1.msra.mxu0 0.0
      %468 = vmatprep.subr.mxu0 0.0
      %469 = vmatpush1.msra.mxu0 0.0
      %470 = vmatprep.subr.mxu0 0.0
      %471 = vmatpush1.msra.mxu0 0.0
      %472 = vmatprep.subr.mxu0 0.0
      %473 = vmatpush1.msra.mxu0 0.0
      %474 = vmatprep.subr.mxu0 0.0
      %475 = vmatpush1.msra.mxu0 0.0
      %476 = vmatprep.subr.mxu0 0.0
      %477 = vmatpush1.msra.mxu0 0.0
      %478 = vmatprep.subr.mxu0 0.0
      %479 = vmatpush1.msra.mxu0 0.0
      %480 = vmatprep.subr.mxu0 0.0
      %481 = vmatpush1.msra.mxu0 0.0
      %482 = vmatprep.subr.mxu0 0.0
      %483 = vmatpush1.msra.mxu0 0.0
      %484 = vmatprep.subr.mxu0 0.0
      %485 = vmatpush1.msra.mxu0 0.0
      %486 = vmatprep.subr.mxu0 0.0
      %487 = vmatpush1.msra.mxu0 0.0
      %488 = vmatprep.mubr.f32.mxu0 0.0
      %489 = vmatmul.mubr.f32.gmra.mrb[0].mxu0 %v397
      %v490 = vpop.f32.mrb[0].mxu0
      %v491 = vadd.f32 %v393, %v490
      %v492 = vpop.f32.mrb[0].mxu0
      %493 = vmatprep.mubr.f32.mxu0 0.0
      %494 = vmatmul.mubr.f32.gmra.mrb[0].mxu0 %v400
      %v495 = vpop.f32.mrb[0].mxu0
      %v496 = vadd.f32 %v393, %v495
      %v497 = vpop.f32.mrb[0].mxu0
      %498 = vmatprep.mubr.f32.mxu0 0.0
      %499 = vmatmul.mubr.f32.gmra.mrb[0].mxu0 %v403
      %v500 = vpop.f32.mrb[0].mxu0
      %v501 = vadd.f32 %v393, %v500
      %v502 = vpop.f32.mrb[0].mxu0
      %503 = vmatprep.mubr.f32.mxu0 0.0
      %504 = vmatmul.mubr.f32.gmra.mrb[0].mxu0 %v406
      %v505 = vpop.f32.mrb[0].mxu0
      %v506 = vadd.f32 %v393, %v505
      %v507 = vpop.f32.mrb[0].mxu0
      %508 = vmatprep.mubr.f32.mxu0 0.0
      %509 = vmatmul.mubr.f32.gmra.mrb[0].mxu0 %v409
      %v510 = vpop.f32.mrb[0].mxu0
      %v511 = vadd.f32 %v393, %v510
      %v512 = vpop.f32.mrb[0].mxu0
      %513 = vmatprep.mubr.f32.mxu0 0.0
      %514 = vmatmul.mubr.f32.gmra.mrb[0].mxu0 %v412
      %v515 = vpop.f32.mrb[0].mxu0
      %v516 = vadd.f32 %v393, %v515
      %v517 = vpop.f32.mrb[0].mxu0
      %518 = vmatprep.mubr.f32.mxu0 0.0
      %519 = vmatmul.mubr.f32.gmra.mrb[0].mxu0 %v415
      %v520 = vpop.f32.mrb[0].mxu0
      %v521 = vadd.f32 %v393, %v520
      %v522 = vpop.f32.mrb[0].mxu0
      %523 = vmatprep.mubr.f32.mxu0 0.0
      %524 = vmatmul.mubr.f32.gmra.mrb[0].mxu0 %v418
      %v525 = vpop.f32.mrb[0].mxu0
      %v526 = vadd.f32 %v393, %v525
      %v527 = vpop.f32.mrb[0].mxu0
      %528 = vdwg.mxu0
      %vm529 = vcmask 80896
      %530 = vst.msk [vmem:[%s226] sm:$0xff] %vm529, %v491
      %531 = vst.msk [vmem:[%s226 + $0x8] sm:$0xff] %vm529, %v496
      %532 = vst.msk [vmem:[%s226 + $0x10] sm:$0xff] %vm529, %v501
      %533 = vst.msk [vmem:[%s226 + $0x18] sm:$0xff] %vm529, %v506
      %534 = vst.msk [vmem:[%s226 + $0x20] sm:$0xff] %vm529, %v511
      %535 = vst.msk [vmem:[%s226 + $0x28] sm:$0xff] %vm529, %v516
      %536 = vst.msk [vmem:[%s226 + $0x30] sm:$0xff] %vm529, %v521
      %537 = vst.msk [vmem:[%s226 + $0x38] sm:$0xff] %vm529, %v526
      %s538 = smul.u32 8, %s16
      %p539 = scmp.lt.s32.totalorder %s538, 31
      %s540 = scalar_select %p539, %s538, 31
      %s541 = smul.addr %s540, 8
      %s542 = scalar_lea.vmem %s5, %s541
      // Predicated region
      $region41: #{tpu_custom_call.1} parent=39 // pred_check
        %p543 = pneg %p144
      $region42: #{tpu_custom_call.1} parent=39 // pred_check_branch
        %545 = sbr.rel (%p543) target = $region44
      $region43: #{tpu_custom_call.1} parent=39 // pred_region
        %s546 = smul.u32 8, %s16
      $region44: #{tpu_custom_call.1} parent=39 // pred_fallthru
        _
    $region40: #{tpu_custom_call.1} parent=5 // pred_fallthru
      _
    %p547 = scmp.le.s32.totalorder 2, %s11
    // Predicated region
    $region45: #{tpu_custom_call.1} parent=5 // pred_check
      %p548 = pneg %p547
    $region46: #{tpu_custom_call.1} parent=5 // pred_check_branch
      %550 = sbr.rel (%p548) target = $region48
    $region47: #{tpu_custom_call.1} parent=5 // pred_region
      %s551 = ssub.s32 %s11, 2
      // Predicated region
      $region49: #{tpu_custom_call.1} parent=47 // pred_check
        %p552 = pneg %p150
      $region50: #{tpu_custom_call.1} parent=47 // pred_check_branch
        %554 = sbr.rel (%p552) target = $region52
      $region51: #{tpu_custom_call.1} parent=47 // pred_region
        %s555 = smul.u32 8, %s17
        %p556 = scmp.lt.s32.totalorder %s555, 31
        %s557 = scalar_select %p556, %s555, 31
        %s558 = smul.addr %s557, 8
        %s559 = scalar_lea.vmem %s5, %s558
      $region52: #{tpu_custom_call.1} parent=47 // pred_fallthru
        _
    $region48: #{tpu_custom_call.1} parent=5 // pred_fallthru
      _
  $region6: #{tpu_custom_call.1} parent=0 // loop_footer
    %s15 = sadd.s32 1, %s11
  $region7: #{tpu_custom_call.1} parent=0 // loop_footer_branch
    %10 = sbr.rel target = $region3
  $region8: #{tpu_custom_call.1} parent=0 // loop_exit
    _

</llo_original>
